<compile_context>
chip_gen: v7x
topology: tpu7x:2x2x1
jax: 0.10.0
libtpu: 0.0.40
codegen_flags: <defaults>
</compile_context>

<pallas_src>
import jax
import jax.numpy as jnp
from jax.experimental import pallas as pl
from jax.experimental.pallas import tpu as pltpu


def _round_up(x, m):
    return ((x + m - 1) // m) * m


# ---------------------------------------------------------------------------
# Kernels: one tile = TB frames, fully fused main branch (+ residual).
# ---------------------------------------------------------------------------
def _fused_kernel_proj(x_ref, km_ref, kr_ref, bm_ref, br_ref, o_ref):
    """Cin != Cout: main branch + projected residual.

    x_ref  : (TB, V*Cin)    input frames (compute dtype)
    km_ref : (V*Cin, V*Cout) fused main-branch matrix (adjacency x conv x BN scale)
    kr_ref : (V*Cin, V*Cout) fused residual matrix (block-diag conv x BN scale)
    bm_ref : (1, V*Cout)     folded main-branch bias (conv biases + BN)
    br_ref : (1, V*Cout)     folded residual bias (conv bias + BN)
    o_ref  : (TB, V*Cout)
    """
    xf = x_ref[...]
    y = jnp.dot(xf, km_ref[...], preferred_element_type=jnp.float32)
    y = jnp.maximum(y + bm_ref[...], 0.0)                      # BN folded + ReLU
    res = jnp.dot(xf, kr_ref[...], preferred_element_type=jnp.float32) + br_ref[...]
    o_ref[...] = (y + res).astype(o_ref.dtype)


def _fused_kernel_identity(x_ref, km_ref, bm_ref, o_ref):
    """Cin == Cout: main branch + identity residual (no residual matmul)."""
    xf = x_ref[...]
    y = jnp.dot(xf, km_ref[...], preferred_element_type=jnp.float32)
    y = jnp.maximum(y + bm_ref[...], 0.0)
    o_ref[...] = (y + xf.astype(jnp.float32)).astype(o_ref.dtype)


# ---------------------------------------------------------------------------
# Wrapper: param folding (Kronecker fusion + BN folding) + layout glue.
# ---------------------------------------------------------------------------
def part_agcn_residual(x, A, params, part=None, eps=1e-5,
                       compute_dtype=jnp.bfloat16, tb=None):
    """x: (N, Cin, T, V) float32 (torch NCHW). Returns (N, Cout, T, V) float32."""
    if part is not None:
        # TODO(synk): part-based adjacency masking not implemented.
        raise NotImplementedError("part masking is not supported in this kernel")

    N, Cin, T, V = x.shape
    S = A.shape[0]
    Wd = params["Wd"]                                   # (S, Cin, Cout)
    Cout = Wd.shape[-1]
    vcin, vcout = V * Cin, V * Cout

    # ---- fold BatchNorm (eval) + conv biases + subset loop into constants ----
    scale = params["bn_gamma"] / jnp.sqrt(params["bn_var"] + eps)        # (Cout,)
    bias_bn = params["bn_beta"] - params["bn_mean"] * scale              # (Cout,)
    a_eff = A + params["PA"]                                             # (S, V, V)
    # Kmain[u*Cin+c, v*Cout+o] = sum_i (A+PA)[i,u,v] * Wd[i,c,o] * scale[o]
    kmain = jnp.einsum("iuv,ico->ucvo", a_eff,
                       Wd * scale[None, None, :]).reshape(vcin, vcout)
    bias_main = jnp.tile(params["bd"].sum(0) * scale + bias_bn, (V,))    # (V*Cout,)

    if Cin != Cout:
        scale_r = params["bnr_gamma"] / jnp.sqrt(params["bnr_var"] + eps)
        bias_r = params["bnr_beta"] + (params["br"] - params["bnr_mean"]) * scale_r
        # Block-diagonal over joints: residual only mixes channels.
        kres = jnp.einsum("uv,co->ucvo", jnp.eye(V, dtype=jnp.float32),
                          params["Wr"] * scale_r[None, :]).reshape(vcin, vcout)
        bias_res = jnp.tile(bias_r, (V,))

    # ---- layout: NCHW -> (N*T, V*Cin), lane axis = joint*channel ----
    nt = N * T
    xf = jnp.transpose(x, (0, 2, 3, 1)).reshape(nt, vcin).astype(compute_dtype)

    if tb is None:
        tb = min(1024, _round_up(nt, 8))        # biggest sensible tile; sweep 512-2048
    tb = max(8, _round_up(tb, 8))
    nt_pad = _round_up(max(nt, tb), tb)
    if nt_pad != nt:
        xf = jnp.pad(xf, ((0, nt_pad - nt), (0, 0)))

    x_spec = pl.BlockSpec((tb, vcin), lambda i: (i, 0))
    out_spec = pl.BlockSpec((tb, vcout), lambda i: (i, 0))
    w_spec = pl.BlockSpec((vcin, vcout), lambda i: (0, 0))
    b_spec = pl.BlockSpec((1, vcout), lambda i: (0, 0))

    if Cin != Cout:
        kernel = _fused_kernel_proj
        operands = (xf,
                    kmain.astype(compute_dtype),
                    kres.astype(compute_dtype),
                    bias_main.reshape(1, vcout).astype(jnp.float32),
                    bias_res.reshape(1, vcout).astype(jnp.float32))
        in_specs = [x_spec, w_spec, w_spec, b_spec, b_spec]
    else:
        kernel = _fused_kernel_identity
        operands = (xf,
                    kmain.astype(compute_dtype),
                    bias_main.reshape(1, vcout).astype(jnp.float32))
        in_specs = [x_spec, w_spec, b_spec]

    out = pl.pallas_call(
        kernel,
        out_shape=jax.ShapeDtypeStruct((nt_pad, vcout), jnp.float32),
        grid=(nt_pad // tb,),
        in_specs=in_specs,
        out_specs=out_spec,
        compiler_params=pltpu.CompilerParams(
            dimension_semantics=("parallel",)),   # megacore sharding on v7x
    )(*operands)

    # TODO(synk): keep activations in (N*T, V*C) layout across consecutive
    # blocks to avoid this transpose round trip once integrated in a network.
    out = out[:nt].reshape(N, T, V, Cout)
    return jnp.transpose(out, (0, 3, 1, 2))


# ---------------------------------------------------------------------------
# Pure-JAX reference mirroring the PyTorch (NCHW) forward semantics.
# ---------------------------------------------------------------------------
def reference(x, A, params, eps=1e-5):
    N, Cin, T, V = x.shape
    S = A.shape[0]
    Cout = params["Wd"].shape[-1]

    def bn(t, g, b, m, var):
        return (t - m[None, :, None, None]) / jnp.sqrt(var + eps)[None, :, None, None] \
            * g[None, :, None, None] + b[None, :, None, None]

    y = jnp.zeros((N, Cout, T, V), jnp.float32)
    x_flat = x.reshape(N, Cin * T, V)
    for i in range(S):
        a_eff = A[i] + params["PA"][i]
        z = jnp.matmul(x_flat, a_eff).reshape(N, Cin, T, V)
        zi = jnp.einsum("nctv,co->notv", z, params["Wd"][i]) \
            + params["bd"][i][None, :, None, None]
        y = y + zi
    y = bn(y, params["bn_gamma"], params["bn_beta"], params["bn_mean"], params["bn_var"])
    y = jnp.maximum(y, 0.0)

    if Cin != Cout:
        r = jnp.einsum("nctv,co->notv", x, params["Wr"]) + params["br"][None, :, None, None]
        r = bn(r, params["bnr_gamma"], params["bnr_beta"],
               params["bnr_mean"], params["bnr_var"])
    else:
        r = x
    return y + r


def _make_params(key, S, Cin, Cout, V):
    ks = jax.random.split(key, 13)
    params = dict(
        PA=0.05 * jax.random.normal(ks[0], (S, V, V), jnp.float32),
        Wd=0.3 * jax.random.normal(ks[1], (S, Cin, Cout), jnp.float32),
        bd=0.1 * jax.random.normal(ks[2], (S, Cout), jnp.float32),
        bn_gamma=1.0 + 0.1 * jax.random.normal(ks[3], (Cout,), jnp.float32),
        bn_beta=0.1 * jax.random.normal(ks[4], (Cout,), jnp.float32),
        bn_mean=0.1 * jax.random.normal(ks[5], (Cout,), jnp.float32),
        bn_var=0.5 + jax.random.uniform(ks[6], (Cout,), jnp.float32),
    )
    if Cin != Cout:
        params.update(
            Wr=0.3 * jax.random.normal(ks[7], (Cin, Cout), jnp.float32),
            br=0.1 * jax.random.normal(ks[8], (Cout,), jnp.float32),
            bnr_gamma=1.0 + 0.1 * jax.random.normal(ks[9], (Cout,), jnp.float32),
            bnr_beta=0.1 * jax.random.normal(ks[10], (Cout,), jnp.float32),
            bnr_mean=0.1 * jax.random.normal(ks[11], (Cout,), jnp.float32),
            bnr_var=0.5 + jax.random.uniform(ks[12], (Cout,), jnp.float32),
        )
    return params


if __name__ == "__main__":
    root = jax.random.PRNGKey(0)
    k1x, k1a, k1p, k2x, k2a, k2p = jax.random.split(root, 6)

    # ---- Case 1: projection residual (Cin != Cout), f32 and bf16 compute ----
    N, Cin, Cout, T, V, S = 2, 4, 8, 8, 17, 3       # V=17 coco joints, S=3 subsets
    x = jax.random.normal(k1x, (N, Cin, T, V), jnp.float32)
    A = 0.2 * jax.random.normal(k1a, (S, V, V), jnp.float32)
    params = _make_params(k1p, S, Cin, Cout, V)
    ref = reference(x, A, params)

    out_f32 = jax.block_until_ready(
        part_agcn_residual(x, A, params, compute_dtype=jnp.float32))
    assert out_f32.shape == (N, Cout, T, V), out_f32.shape
    err = float(jnp.max(jnp.abs(out_f32 - ref)))
    assert err < 5e-4, f"f32 kernel/reference mismatch: max abs err = {err}"

    out_bf16 = jax.block_until_ready(
        part_agcn_residual(x, A, params, compute_dtype=jnp.bfloat16))
    err_bf = float(jnp.max(jnp.abs(out_bf16 - ref)))
    assert err_bf < 5e-2, f"bf16 kernel/reference mismatch: max abs err = {err_bf}"

    # ---- Case 2: identity residual (Cin == Cout), multi-tile grid + padding ----
    N2, C2, T2 = 2, 8, 20                            # N*T = 40, tb=16 -> grid=3, pad 8
    x2 = jax.random.normal(k2x, (N2, C2, T2, V), jnp.float32)
    A2 = 0.2 * jax.random.normal(k2a, (S, V, V), jnp.float32)
    params2 = _make_params(k2p, S, C2, C2, V)
    ref2 = reference(x2, A2, params2)
    out2 = jax.block_until_ready(
        part_agcn_residual(x2, A2, params2, compute_dtype=jnp.float32, tb=16))
    assert out2.shape == (N2, C2, T2, V), out2.shape
    err2 = float(jnp.max(jnp.abs(out2 - ref2)))
    assert err2 < 5e-4, f"identity-path mismatch: max abs err = {err2}"

    print("KERNEL_OK")
</pallas_src>

<mosaic_0001>
module attributes {stable_mosaic.version = 11 : i64} {
  func.func @_fused_kernel_proj(%arg0: i32, %arg1: memref<16x68xf32, #tpu.memory_space<vmem>>, %arg2: memref<68x136xf32, #tpu.memory_space<vmem>>, %arg3: memref<68x136xf32, #tpu.memory_space<vmem>>, %arg4: memref<1x136xf32, #tpu.memory_space<vmem>>, %arg5: memref<1x136xf32, #tpu.memory_space<vmem>>, %arg6: memref<16x136xf32, #tpu.memory_space<vmem>>) attributes {dimension_semantics = [#tpu.dimension_semantics<parallel>], iteration_bounds = array<i64: 1>, scalar_prefetch = 0 : i64, scratch_operands = 0 : i64, tpu.core_type = #tpu.core_type<tc>, window_params = [{transform_indices = @transform_0, window_bounds = array<i64: 16, 68>}, {pipeline_mode = #tpu.pipeline_mode<synchronous>, transform_indices = @transform_1, window_bounds = array<i64: 68, 136>}, {pipeline_mode = #tpu.pipeline_mode<synchronous>, transform_indices = @transform_2, window_bounds = array<i64: 68, 136>}, {pipeline_mode = #tpu.pipeline_mode<synchronous>, transform_indices = @transform_3, window_bounds = array<i64: 1, 136>}, {pipeline_mode = #tpu.pipeline_mode<synchronous>, transform_indices = @transform_4, window_bounds = array<i64: 1, 136>}, {transform_indices = @transform_5, window_bounds = array<i64: 16, 136>}]} {
    %c0 = arith.constant 0 : index
    %c0_0 = arith.constant 0 : index
    %0 = vector.load %arg1[%c0, %c0_0] : memref<16x68xf32, #tpu.memory_space<vmem>>, vector<16x68xf32>
    %c0_1 = arith.constant 0 : index
    %c0_2 = arith.constant 0 : index
    %1 = vector.load %arg2[%c0_1, %c0_2] : memref<68x136xf32, #tpu.memory_space<vmem>>, vector<68x136xf32>
    %cst = arith.constant dense<0.000000e+00> : vector<16x136xf32>
    %2 = tpu.matmul %0, %1, %cst {dimension_numbers = #tpu.dot_dimension_numbers<[1], [0], [0], [1], [0, 0, 1, 1], [], []>} : vector<16x68xf32>, vector<68x136xf32>, vector<16x136xf32> -> vector<16x136xf32>
    %c0_3 = arith.constant 0 : index
    %c0_4 = arith.constant 0 : index
    %3 = vector.load %arg4[%c0_3, %c0_4] : memref<1x136xf32, #tpu.memory_space<vmem>>, vector<1x136xf32>
    %4 = vector.broadcast %3 : vector<1x136xf32> to vector<16x136xf32>
    %5 = arith.addf %2, %4 : vector<16x136xf32>
    %cst_5 = arith.constant 0.000000e+00 : f32
    %6 = vector.broadcast %cst_5 : f32 to vector<16x136xf32>
    %7 = arith.maximumf %5, %6 : vector<16x136xf32>
    %c0_6 = arith.constant 0 : index
    %c0_7 = arith.constant 0 : index
    %8 = vector.load %arg3[%c0_6, %c0_7] : memref<68x136xf32, #tpu.memory_space<vmem>>, vector<68x136xf32>
    %cst_8 = arith.constant dense<0.000000e+00> : vector<16x136xf32>
    %9 = tpu.matmul %0, %8, %cst_8 {dimension_numbers = #tpu.dot_dimension_numbers<[1], [0], [0], [1], [0, 0, 1, 1], [], []>} : vector<16x68xf32>, vector<68x136xf32>, vector<16x136xf32> -> vector<16x136xf32>
    %c0_9 = arith.constant 0 : index
    %c0_10 = arith.constant 0 : index
    %10 = vector.load %arg5[%c0_9, %c0_10] : memref<1x136xf32, #tpu.memory_space<vmem>>, vector<1x136xf32>
    %11 = vector.broadcast %10 : vector<1x136xf32> to vector<16x136xf32>
    %12 = arith.addf %9, %11 : vector<16x136xf32>
    %13 = arith.addf %7, %12 : vector<16x136xf32>
    %c0_11 = arith.constant 0 : index
    %c0_12 = arith.constant 0 : index
    %14 = vector.load %arg6[%c0_11, %c0_12] : memref<16x136xf32, #tpu.memory_space<vmem>>, vector<16x136xf32>
    tpu.vector_store %arg6[%c0_11, %c0_12], %13 {strides = array<i32>} : memref<16x136xf32, #tpu.memory_space<vmem>>, vector<16x136xf32>,
    return
  }
  func.func @transform_0(%arg0: i32) -> (i32, i32) {
    %c0_i32 = arith.constant 0 : i32
    %c0_i32_0 = arith.constant 0 : i32
    return %arg0, %c0_i32 : i32, i32
  }
  func.func @transform_1(%arg0: i32) -> (i32, i32) {
    %c0_i32 = arith.constant 0 : i32
    %c0_i32_0 = arith.constant 0 : i32
    %c0_i32_1 = arith.constant 0 : i32
    return %c0_i32, %c0_i32_0 : i32, i32
  }
  func.func @transform_2(%arg0: i32) -> (i32, i32) {
    %c0_i32 = arith.constant 0 : i32
    %c0_i32_0 = arith.constant 0 : i32
    %c0_i32_1 = arith.constant 0 : i32
    return %c0_i32, %c0_i32_0 : i32, i32
  }
  func.func @transform_3(%arg0: i32) -> (i32, i32) {
    %c0_i32 = arith.constant 0 : i32
    %c0_i32_0 = arith.constant 0 : i32
    %c0_i32_1 = arith.constant 0 : i32
    return %c0_i32, %c0_i32_0 : i32, i32
  }
  func.func @transform_4(%arg0: i32) -> (i32, i32) {
    %c0_i32 = arith.constant 0 : i32
    %c0_i32_0 = arith.constant 0 : i32
    %c0_i32_1 = arith.constant 0 : i32
    return %c0_i32, %c0_i32_0 : i32, i32
  }
  func.func @transform_5(%arg0: i32) -> (i32, i32) {
    %c0_i32 = arith.constant 0 : i32
    %c0_i32_0 = arith.constant 0 : i32
    return %arg0, %c0_i32 : i32, i32
  }
}

</mosaic_0001>

<llo_original>
// kernel: tpu_custom_call.1
$region0: #{tpu_custom_call.1}
  #allocation0 [shape = 'u32[]', space=smem, size = 0x4, offset = 0x4, fixed_abs, tag = 'smem constant byte address 0x4 - core index']
  #allocation1 [shape = 'u32[144,128]{1,0:T(1,128)}', space=vmem, size = 0x12000, scoped, tag = 'internal scratch']
  %s0 = inlined_call_operand.vmem [shape: f32[16,68], index: 0, kind: input, shape index: {}]
  %s1 = inlined_call_operand.vmem [shape: f32[68,136], index: 1, kind: input, shape index: {}]
  %s2 = inlined_call_operand.vmem [shape: f32[68,136], index: 2, kind: input, shape index: {}]
  %s3 = inlined_call_operand.vmem [shape: f32[1,136], index: 3, kind: input, shape index: {}]
  %s4 = inlined_call_operand.vmem [shape: f32[1,136], index: 4, kind: input, shape index: {}]
  %s5 = inlined_call_operand.hbm [shape: f32[16,136], index: 5, kind: output, shape index: {}]
  %s6 = sld [smem:[#allocation0]]
  $region30: #{tpu_custom_call.1} parent=0
    _
  %s8 = ssub.s32 1, %s6
  %s9 = scalar_select 0, %s8, %s6
  $region1: #{tpu_custom_call.1} parent=0
    #allocation2 [shape = 'u8[16384]{0}', space=vmem, size = 0x4000, scoped, tag = 'output window, operand 0, single buffered']
    #allocation3 [shape = 's32[1]{0}', space=sflag, size = 0x4, scoped, tag = 'scoped memory for tpu_custom_call.1']
    %10 = vsyncpa [#allocation3], 0
    // Predicated region
    $region2: #{tpu_custom_call.1} parent=1 // pred_check
      _
    $region3: #{tpu_custom_call.1} parent=1 // pred_check_branch
      %12 = sbr.rel (0) target = $region5
    $region4: #{tpu_custom_call.1} parent=1 // pred_region
      _
    $region5: #{tpu_custom_call.1} parent=1 // pred_fallthru
      _
    // Predicated region
    $region6: #{tpu_custom_call.1} parent=1 // pred_check
      _
    $region7: #{tpu_custom_call.1} parent=1 // pred_check_branch
      %14 = sbr.rel (0) target = $region9
    $region8: #{tpu_custom_call.1} parent=1 // pred_region
      _
    $region9: #{tpu_custom_call.1} parent=1 // pred_fallthru
      _
    // Predicated region
    $region10: #{tpu_custom_call.1} parent=1 // pred_check
      _
    $region11: #{tpu_custom_call.1} parent=1 // pred_check_branch
      %16 = sbr.rel (0) target = $region13
    $region12: #{tpu_custom_call.1} parent=1 // pred_region
      _
    $region13: #{tpu_custom_call.1} parent=1 // pred_fallthru
      _
    // Predicated region
    $region14: #{tpu_custom_call.1} parent=1 // pred_check
      _
    $region15: #{tpu_custom_call.1} parent=1 // pred_check_branch
      %18 = sbr.rel (0) target = $region17
    $region16: #{tpu_custom_call.1} parent=1 // pred_region
      _
    $region17: #{tpu_custom_call.1} parent=1 // pred_fallthru
      _
    // Predicated region
    $region18: #{tpu_custom_call.1} parent=1 // pred_check
      _
    $region19: #{tpu_custom_call.1} parent=1 // pred_check_branch
      %20 = sbr.rel (0) target = $region21
    $region20: #{tpu_custom_call.1} parent=1 // pred_region
      _
    $region21: #{tpu_custom_call.1} parent=1 // pred_fallthru
      _
    %v21 = vld [vmem:[%s0] sm:$0xff]
    %v22 = vld [vmem:[%s0 + $0x8] sm:$0xff]
    %v23 = vld [vmem:[%s1] sm:$0xff]
    %v24 = vld [vmem:[%s1 + $0x8] sm:$0xff]
    %v25 = vld [vmem:[%s1 + $0x10] sm:$0xff]
    %v26 = vld [vmem:[%s1 + $0x18] sm:$0xff]
    %v27 = vld [vmem:[%s1 + $0x20] sm:$0xff]
    %v28 = vld [vmem:[%s1 + $0x28] sm:$0xff]
    %v29 = vld [vmem:[%s1 + $0x30] sm:$0xff]
    %v30 = vld [vmem:[%s1 + $0x38] sm:$0xff]
    %v31 = vld [vmem:[%s1 + $0x40] sm:$0xff]
    %v32 = vld [vmem:[%s1 + $0x48] sm:$0xff]
    %v33 = vld [vmem:[%s1 + $0x50] sm:$0xff]
    %v34 = vld [vmem:[%s1 + $0x58] sm:$0xff]
    %v35 = vld [vmem:[%s1 + $0x60] sm:$0xff]
    %v36 = vld [vmem:[%s1 + $0x68] sm:$0xff]
    %v37 = vld [vmem:[%s1 + $0x70] sm:$0xff]
    %v38 = vld [vmem:[%s1 + $0x78] sm:$0xff]
    %v39 = vld [vmem:[%s1 + $0x80] sm:$0xf]
    %v40 = vld [vmem:[%s1 + $0x88] sm:$0xf]
    %v41 = vld [vmem:[%s3] sm:$0x3]
    %v43 = vlaneseq
    %v44 = vshrl.u32 %v43, 7
    %v45 = vsub.s32 0, %v44
    %v46 = vrot.slane %v41, %v45
    %v47 = vlaneseq
    %v48 = vshrl.u32 %v47, 7
    %v49 = vsub.s32 1, %v48
    %v50 = vrot.slane %v41, %v49
    %vm53 = vcmask 556032
    %v55 = vsel %vm53, %v21, 0
    %v58 = vsel %vm53, %v22, 0
    %vm60 = vcmask 1043456
    %v62 = vsel %vm60, %v39, 0
    %v65 = vsel %vm60, %v40, 0
    %67 = vmatprep.subr.mxu0 %v24
    %68 = vmatpush1.msra.mxu0 %v23
    %69 = vmatprep.subr.mxu0 %v26
    %70 = vmatpush1.msra.mxu0 %v25
    %71 = vmatprep.subr.mxu0 %v28
    %72 = vmatpush1.msra.mxu0 %v27
    %73 = vmatprep.subr.mxu0 %v30
    %74 = vmatpush1.msra.mxu0 %v29
    %75 = vmatprep.subr.mxu0 %v32
    %76 = vmatpush1.msra.mxu0 %v31
    %77 = vmatprep.subr.mxu0 %v34
    %78 = vmatpush1.msra.mxu0 %v33
    %79 = vmatprep.subr.mxu0 %v36
    %80 = vmatpush1.msra.mxu0 %v35
    %81 = vmatprep.subr.mxu0 %v38
    %82 = vmatpush1.msra.mxu0 %v37
    %83 = vmatprep.subr.mxu0 %v65
    %84 = vmatpush1.msra.mxu0 %v62
    %85 = vmatprep.subr.mxu0 0.0
    %86 = vmatpush1.msra.mxu0 0.0
    %87 = vmatprep.subr.mxu0 0.0
    %88 = vmatpush1.msra.mxu0 0.0
    %89 = vmatprep.subr.mxu0 0.0
    %90 = vmatpush1.msra.mxu0 0.0
    %91 = vmatprep.subr.mxu0 0.0
    %92 = vmatpush1.msra.mxu0 0.0
    %93 = vmatprep.subr.mxu0 0.0
    %94 = vmatpush1.msra.mxu0 0.0
    %95 = vmatprep.subr.mxu0 0.0
    %96 = vmatpush1.msra.mxu0 0.0
    %97 = vmatprep.subr.mxu0 0.0
    %98 = vmatpush1.msra.mxu0 0.0
    %99 = vmatprep.subr.mxu0 0.0
    %100 = vmatpush1.msra.mxu0 0.0
    %101 = vmatprep.subr.mxu0 0.0
    %102 = vmatpush1.msra.mxu0 0.0
    %103 = vmatprep.subr.mxu0 0.0
    %104 = vmatpush1.msra.mxu0 0.0
    %105 = vmatprep.subr.mxu0 0.0
    %106 = vmatpush1.msra.mxu0 0.0
    %107 = vmatprep.subr.mxu0 0.0
    %108 = vmatpush1.msra.mxu0 0.0
    %109 = vmatprep.subr.mxu0 0.0
    %110 = vmatpush1.msra.mxu0 0.0
    %111 = vmatprep.subr.mxu0 0.0
    %112 = vmatpush1.msra.mxu0 0.0
    %113 = vmatprep.subr.mxu0 0.0
    %114 = vmatpush1.msra.mxu0 0.0
    %115 = vmatprep.subr.mxu0 0.0
    %116 = vmatpush1.msra.mxu0 0.0
    %117 = vmatprep.subr.mxu0 0.0
    %118 = vmatpush1.msra.mxu0 0.0
    %119 = vmatprep.subr.mxu0 0.0
    %120 = vmatpush1.msra.mxu0 0.0
    %121 = vmatprep.subr.mxu0 0.0
    %122 = vmatpush1.msra.mxu0 0.0
    %123 = vmatprep.subr.mxu0 0.0
    %124 = vmatpush1.msra.mxu0 0.0
    %125 = vmatprep.subr.mxu0 0.0
    %126 = vmatpush1.msra.mxu0 0.0
    %127 = vmatprep.subr.mxu0 0.0
    %128 = vmatpush1.msra.mxu0 0.0
    %129 = vmatprep.subr.mxu0 0.0
    %130 = vmatpush1.msra.mxu0 0.0
    %131 = vmatprep.mubr.f32.mxu0 0.0
    %132 = vmatmul.mubr.f32.gmra.mrb[0].mxu0 %v55
    %v133 = vpop.f32.mrb[0].mxu0
    %v134 = vadd.f32 %v46, %v133
    %v135 = vpop.f32.mrb[0].mxu0
    %v136 = vadd.f32 %v50, %v135
    %137 = vmatprep.mubr.f32.mxu0 0.0
    %138 = vmatmul.mubr.f32.gmra.mrb[0].mxu0 %v58
    %v139 = vpop.f32.mrb[0].mxu0
    %v140 = vadd.f32 %v46, %v139
    %v141 = vpop.f32.mrb[0].mxu0
    %v142 = vadd.f32 %v50, %v141
    %143 = vdwg.mxu0
    %v144 = vmax.f32 %v134, 0.0
    %v145 = vmax.f32 %v136, 0.0
    %v146 = vmax.f32 %v140, 0.0
    %v147 = vmax.f32 %v142, 0.0
    %v148 = vld [vmem:[%s2] sm:$0xff]
    %v149 = vld [vmem:[%s2 + $0x8] sm:$0xff]
    %v150 = vld [vmem:[%s2 + $0x10] sm:$0xff]
    %v151 = vld [vmem:[%s2 + $0x18] sm:$0xff]
    %v152 = vld [vmem:[%s2 + $0x20] sm:$0xff]
    %v153 = vld [vmem:[%s2 + $0x28] sm:$0xff]
    %v154 = vld [vmem:[%s2 + $0x30] sm:$0xff]
    %v155 = vld [vmem:[%s2 + $0x38] sm:$0xff]
    %v156 = vld [vmem:[%s2 + $0x40] sm:$0xff]
    %v157 = vld [vmem:[%s2 + $0x48] sm:$0xff]
    %v158 = vld [vmem:[%s2 + $0x50] sm:$0xff]
    %v159 = vld [vmem:[%s2 + $0x58] sm:$0xff]
    %v160 = vld [vmem:[%s2 + $0x60] sm:$0xff]
    %v161 = vld [vmem:[%s2 + $0x68] sm:$0xff]
    %v162 = vld [vmem:[%s2 + $0x70] sm:$0xff]
    %v163 = vld [vmem:[%s2 + $0x78] sm:$0xff]
    %v164 = vld [vmem:[%s2 + $0x80] sm:$0xf]
    %v165 = vld [vmem:[%s2 + $0x88] sm:$0xf]
    %v166 = vld [vmem:[%s4] sm:$0x3]
    %v168 = vlaneseq
    %v169 = vshrl.u32 %v168, 7
    %v170 = vsub.s32 0, %v169
    %v171 = vrot.slane %v166, %v170
    %v172 = vlaneseq
    %v173 = vshrl.u32 %v172, 7
    %v174 = vsub.s32 1, %v173
    %v175 = vrot.slane %v166, %v174
    %v179 = vsel %vm60, %v164, 0
    %v182 = vsel %vm60, %v165, 0
    %184 = vmatprep.subr.mxu0 %v149
    %185 = vmatpush1.msra.mxu0 %v148
    %186 = vmatprep.subr.mxu0 %v151
    %187 = vmatpush1.msra.mxu0 %v150
    %188 = vmatprep.subr.mxu0 %v153
    %189 = vmatpush1.msra.mxu0 %v152
    %190 = vmatprep.subr.mxu0 %v155
    %191 = vmatpush1.msra.mxu0 %v154
    %192 = vmatprep.subr.mxu0 %v157
    %193 = vmatpush1.msra.mxu0 %v156
    %194 = vmatprep.subr.mxu0 %v159
    %195 = vmatpush1.msra.mxu0 %v158
    %196 = vmatprep.subr.mxu0 %v161
    %197 = vmatpush1.msra.mxu0 %v160
    %198 = vmatprep.subr.mxu0 %v163
    %199 = vmatpush1.msra.mxu0 %v162
    %200 = vmatprep.subr.mxu0 %v182
    %201 = vmatpush1.msra.mxu0 %v179
    %202 = vmatprep.subr.mxu0 0.0
    %203 = vmatpush1.msra.mxu0 0.0
    %204 = vmatprep.subr.mxu0 0.0
    %205 = vmatpush1.msra.mxu0 0.0
    %206 = vmatprep.subr.mxu0 0.0
    %207 = vmatpush1.msra.mxu0 0.0
    %208 = vmatprep.subr.mxu0 0.0
    %209 = vmatpush1.msra.mxu0 0.0
    %210 = vmatprep.subr.mxu0 0.0
    %211 = vmatpush1.msra.mxu0 0.0
    %212 = vmatprep.subr.mxu0 0.0
    %213 = vmatpush1.msra.mxu0 0.0
    %214 = vmatprep.subr.mxu0 0.0
    %215 = vmatpush1.msra.mxu0 0.0
    %216 = vmatprep.subr.mxu0 0.0
    %217 = vmatpush1.msra.mxu0 0.0
    %218 = vmatprep.subr.mxu0 0.0
    %219 = vmatpush1.msra.mxu0 0.0
    %220 = vmatprep.subr.mxu0 0.0
    %221 = vmatpush1.msra.mxu0 0.0
    %222 = vmatprep.subr.mxu0 0.0
    %223 = vmatpush1.msra.mxu0 0.0
    %224 = vmatprep.subr.mxu0 0.0
    %225 = vmatpush1.msra.mxu0 0.0
    %226 = vmatprep.subr.mxu0 0.0
    %227 = vmatpush1.msra.mxu0 0.0
    %228 = vmatprep.subr.mxu0 0.0
    %229 = vmatpush1.msra.mxu0 0.0
    %230 = vmatprep.subr.mxu0 0.0
    %231 = vmatpush1.msra.mxu0 0.0
    %232 = vmatprep.subr.mxu0 0.0
    %233 = vmatpush1.msra.mxu0 0.0
    %234 = vmatprep.subr.mxu0 0.0
    %235 = vmatpush1.msra.mxu0 0.0
    %236 = vmatprep.subr.mxu0 0.0
    %237 = vmatpush1.msra.mxu0 0.0
    %238 = vmatprep.subr.mxu0 0.0
    %239 = vmatpush1.msra.mxu0 0.0
    %240 = vmatprep.subr.mxu0 0.0
    %241 = vmatpush1.msra.mxu0 0.0
    %242 = vmatprep.subr.mxu0 0.0
    %243 = vmatpush1.msra.mxu0 0.0
    %244 = vmatprep.subr.mxu0 0.0
    %245 = vmatpush1.msra.mxu0 0.0
    %246 = vmatprep.subr.mxu0 0.0
    %247 = vmatpush1.msra.mxu0 0.0
    %248 = vmatprep.mubr.f32.mxu0 0.0
    %249 = vmatmul.mubr.f32.gmra.mrb[0].mxu0 %v55
    %v250 = vpop.f32.mrb[0].mxu0
    %v251 = vadd.f32 %v171, %v250
    %v252 = vpop.f32.mrb[0].mxu0
    %v253 = vadd.f32 %v175, %v252
    %254 = vmatprep.mubr.f32.mxu0 0.0
    %255 = vmatmul.mubr.f32.gmra.mrb[0].mxu0 %v58
    %v256 = vpop.f32.mrb[0].mxu0
    %v257 = vadd.f32 %v171, %v256
    %v258 = vpop.f32.mrb[0].mxu0
    %v259 = vadd.f32 %v175, %v258
    %260 = vdwg.mxu0
    %v261 = vadd.f32 %v144, %v251
    %v262 = vadd.f32 %v145, %v253
    %v263 = vadd.f32 %v146, %v257
    %v264 = vadd.f32 %v147, %v259
    %265 = vst [vmem:[#allocation2] sm:$0xff] %v261
    %vm266 = vcmask 64512
    %267 = vst.msk [vmem:[#allocation2 + $0x8] sm:$0xff] %vm266, %v262
    %268 = vst [vmem:[#allocation2 + $0x10] sm:$0xff] %v263
    %269 = vst.msk [vmem:[#allocation2 + $0x18] sm:$0xff] %vm266, %v264
    // Predicated region
    $region22: #{tpu_custom_call.1} parent=1 // pred_check
      _
    $region23: #{tpu_custom_call.1} parent=1 // pred_check_branch
      %271 = sbr.rel (0) target = $region25
    $region24: #{tpu_custom_call.1} parent=1 // pred_region
      %s273 = ssub.s32 512, 512
      %274 = vsyncadd [#allocation3], %s273
      %s275 = sshll.u32 [#allocation2], 4
      %s276 = int_to_ptr.vmem [resolvable:$true] %s275
      %281 = dma.vmem_to_hbm [thread:$0]  %s276, 512, %s5, [#allocation3], 256, 256, 16
    $region25: #{tpu_custom_call.1} parent=1 // pred_fallthru
      _
    // Predicated region
    $region26: #{tpu_custom_call.1} parent=1 // pred_check
      _
    $region27: #{tpu_custom_call.1} parent=1 // pred_check_branch
      %283 = sbr.rel (0) target = $region29
    $region28: #{tpu_custom_call.1} parent=1 // pred_region
      %284 = dma.done [#allocation3], 512
    $region29: #{tpu_custom_call.1} parent=1 // pred_fallthru
      _
    %285 = vsyncpa [#allocation3], 1

</llo_original>
